<compile_context>
chip_gen: v5e
topology: v5e:2x2
jax: 0.10.0
libtpu: 0.0.40
codegen_flags: <defaults>
</compile_context>

<pallas_src>
import math

import jax
import jax.numpy as jnp
from jax.experimental import pallas as pl
from jax.experimental.pallas import tpu as pltpu


def poly2_kernel(xt_ref, ut_ref, o_ref):
    # xt_ref: (F_pad, TB)    bf16  -- x^T tile: features on sublanes, batch on lanes
    # ut_ref: (F_pad, F_pad) bf16  -- U^T, resident across all grid steps
    # o_ref : (1, TB)        f32   -- lane-dense output row
    xt = xt_ref[...]
    ut = ut_ref[...]
    # (U^T @ x^T) == (x @ U)^T, shape (F_pad, TB); MXU matmul with f32 accumulation.
    xu_t = jnp.dot(ut, xt, preferred_element_type=jnp.float32)
    # sum_j x_j * (x @ U)_j  -> reduce over the feature (sublane) axis.
    s = jnp.sum(xu_t * xt.astype(jnp.float32), axis=0, keepdims=True)  # (1, TB)
    o_ref[...] = jax.nn.sigmoid(s)


def _round_up(n, m):
    return ((n + m - 1) // m) * m


def poly2_forward(x, u_mat, *, tb=1024):
    """x: (B, F) float32, u_mat: (F, F) float32 upper-triangular pair-weight matrix.

    Returns (B,) float32 probabilities, matching the PyTorch forward.
    """
    B, F = x.shape
    LANE = 128   # lane width
    SUB = 16     # bf16 sublane packing

    # Batch tile: multiple of 128, no larger than needed for small batches.
    tb = max(LANE, min(_round_up(tb, LANE), _round_up(B, LANE)))
    b_pad = _round_up(B, tb)
    f_pad = _round_up(F, SUB)

    # Host-side glue: pad, transpose (batch -> lane axis), cast to bf16.
    xt = jnp.zeros((f_pad, b_pad), dtype=jnp.bfloat16)
    xt = xt.at[:F, :B].set(x.astype(jnp.bfloat16).T)
    ut = jnp.zeros((f_pad, f_pad), dtype=jnp.bfloat16)
    ut = ut.at[:F, :F].set(u_mat.astype(jnp.bfloat16).T)

    n_tiles = b_pad // tb
    cost = pl.CostEstimate(
        flops=2 * b_pad * f_pad * f_pad,
        transcendentals=b_pad,
        bytes_accessed=2 * (f_pad * b_pad + f_pad * f_pad) + 4 * b_pad,
    )

    out = pl.pallas_call(
        poly2_kernel,
        out_shape=jax.ShapeDtypeStruct((1, b_pad), jnp.float32),
        grid=(n_tiles,),
        in_specs=[
            pl.BlockSpec((f_pad, tb), lambda i: (0, i)),        # x^T tiles, pipelined
            pl.BlockSpec((f_pad, f_pad), lambda i: (0, 0)),     # U^T resident in VMEM
        ],
        out_specs=pl.BlockSpec((1, tb), lambda i: (0, i)),      # lane-dense stores
        compiler_params=pltpu.CompilerParams(
            dimension_semantics=("parallel",),                  # shard batch across TCs (v7x)
        ),
        cost_estimate=cost,
    )(xt, ut)

    return out[0, :B]  # drop zero-padding rows (would be sigmoid(0)=0.5)


def build_pair_weight_matrix(w_flat, num_features):
    """Scatter the (cross_dims,) pair weights into an upper-triangular (F, F) matrix."""
    rows, cols = jnp.triu_indices(num_features, k=1)
    u = jnp.zeros((num_features, num_features), dtype=jnp.float32)
    u = u.at[rows, cols].set(w_flat)
    return u


if __name__ == "__main__":
    # field_dims -> num_features = sum(field_dims)
    field_dims = [3, 5, 8]
    num_features = sum(field_dims)                        # F = 16
    cross_dims = num_features * (num_features - 1) // 2   # 120
    batch = 8

    key = jax.random.PRNGKey(0)
    k_x, k_w = jax.random.split(key)

    # Deterministic "xavier_uniform_" for a (cross_dims, 1) parameter:
    # fan_in = 1, fan_out = cross_dims -> bound = sqrt(6 / (fan_in + fan_out)).
    bound = math.sqrt(6.0 / (1.0 + cross_dims))
    w = jax.random.uniform(
        k_w, (cross_dims,), dtype=jnp.float32, minval=-bound, maxval=bound
    )
    x = jax.random.uniform(k_x, (batch, num_features), dtype=jnp.float32)

    u_mat = build_pair_weight_matrix(w, num_features)

    out = poly2_forward(x, u_mat)
    out = jax.block_until_ready(out)
    assert out.shape == (batch,)

    rows, cols = jnp.triu_indices(num_features, k=1)

    # Check 1 (tight): reference using the same bf16-quantized operands in f32 math.
    x_q = x.astype(jnp.bfloat16).astype(jnp.float32)
    u_q = u_mat.astype(jnp.bfloat16).astype(jnp.float32)
    ref_q = jax.nn.sigmoid(
        jnp.sum(x_q[:, rows] * x_q[:, cols] * u_q[rows, cols][None, :], axis=1)
    )
    assert jnp.allclose(out, ref_q, atol=1e-4, rtol=1e-4)

    # Check 2 (loose): original full-f32 PyTorch semantics (bf16 input quantization only).
    ref_f32 = jax.nn.sigmoid(jnp.sum(x[:, rows] * x[:, cols] * w[None, :], axis=1))
    assert jnp.allclose(out, ref_f32, atol=2e-2, rtol=2e-2)

    print("KERNEL_OK")
</pallas_src>

<mosaic_0001>
module attributes {stable_mosaic.version = 11 : i64} {
  func.func @poly2_kernel(%arg0: i32, %arg1: memref<16x128xbf16, #tpu.memory_space<vmem>>, %arg2: memref<16x16xbf16, #tpu.memory_space<vmem>>, %arg3: memref<1x128xf32, #tpu.memory_space<vmem>>) attributes {dimension_semantics = [#tpu.dimension_semantics<parallel>], iteration_bounds = array<i64: 1>, scalar_prefetch = 0 : i64, scratch_operands = 0 : i64, tpu.core_type = #tpu.core_type<tc>, window_params = [{transform_indices = @transform_0, window_bounds = array<i64: 16, 128>}, {pipeline_mode = #tpu.pipeline_mode<synchronous>, transform_indices = @transform_1, window_bounds = array<i64: 16, 16>}, {transform_indices = @transform_2, window_bounds = array<i64: 1, 128>}]} {
    %c0 = arith.constant 0 : index
    %c0_0 = arith.constant 0 : index
    %0 = vector.load %arg1[%c0, %c0_0] : memref<16x128xbf16, #tpu.memory_space<vmem>>, vector<16x128xbf16>
    %c0_1 = arith.constant 0 : index
    %c0_2 = arith.constant 0 : index
    %1 = vector.load %arg2[%c0_1, %c0_2] : memref<16x16xbf16, #tpu.memory_space<vmem>>, vector<16x16xbf16>
    %cst = arith.constant dense<0.000000e+00> : vector<16x128xf32>
    %2 = tpu.matmul %1, %0, %cst {dimension_numbers = #tpu.dot_dimension_numbers<[1], [0], [0], [1], [0, 0, 1, 1], [], []>} : vector<16x16xbf16>, vector<16x128xbf16>, vector<16x128xf32> -> vector<16x128xf32>
    %3 = arith.extf %0 : vector<16x128xbf16> to vector<16x128xf32>
    %4 = arith.mulf %2, %3 : vector<16x128xf32>
    %cst_3 = arith.constant dense<0.000000e+00> : vector<128xf32>
    %5 = vector.multi_reduction <add>, %4, %cst_3 [0] : vector<16x128xf32> to vector<128xf32>
    %6 = vector.shape_cast %5 : vector<128xf32> to vector<1x128xf32>
    %7 = arith.negf %6 : vector<1x128xf32>
    %8 = math.exp %7 : vector<1x128xf32>
    %cst_4 = arith.constant 1.000000e+00 : f32
    %9 = vector.broadcast %cst_4 : f32 to vector<1x128xf32>
    %10 = arith.addf %9, %8 : vector<1x128xf32>
    %11 = arith.divf %9, %10 : vector<1x128xf32>
    %c0_5 = arith.constant 0 : index
    %c0_6 = arith.constant 0 : index
    %12 = vector.load %arg3[%c0_5, %c0_6] : memref<1x128xf32, #tpu.memory_space<vmem>>, vector<1x128xf32>
    tpu.vector_store %arg3[%c0_5, %c0_6], %11 {strides = array<i32>} : memref<1x128xf32, #tpu.memory_space<vmem>>, vector<1x128xf32>,
    return
  }
  func.func @transform_0(%arg0: i32) -> (i32, i32) {
    %c0_i32 = arith.constant 0 : i32
    %c0_i32_0 = arith.constant 0 : i32
    return %c0_i32, %arg0 : i32, i32
  }
  func.func @transform_1(%arg0: i32) -> (i32, i32) {
    %c0_i32 = arith.constant 0 : i32
    %c0_i32_0 = arith.constant 0 : i32
    %c0_i32_1 = arith.constant 0 : i32
    return %c0_i32, %c0_i32_0 : i32, i32
  }
  func.func @transform_2(%arg0: i32) -> (i32, i32) {
    %c0_i32 = arith.constant 0 : i32
    %c0_i32_0 = arith.constant 0 : i32
    return %c0_i32, %arg0 : i32, i32
  }
}

</mosaic_0001>

<llo_original>
// kernel: tpu_custom_call.1
$region0: #{tpu_custom_call.1}
  #allocation0 [shape = 'u32[]', space=smem, size = 0x4, offset = 0x4, fixed_abs, tag = 'smem constant byte address 0x4 - core index']
  #allocation1 [shape = 'u32[72,128]{1,0:T(1,128)}', space=vmem, size = 0x9000, scoped, tag = 'internal scratch']
  %s0 = inlined_call_operand.hbm [shape: bf16[16,128], index: 0, kind: input, shape index: {}]
  %s1 = inlined_call_operand.hbm [shape: bf16[16,16], index: 1, kind: input, shape index: {}]
  %s2 = inlined_call_operand.hbm [shape: f32[1,128], index: 2, kind: output, shape index: {}]
  %s3 = sld [smem:[#allocation0]]
  $region26: #{tpu_custom_call.1} parent=0
    _
  %s5 = ssub.s32 1, %s3
  %s6 = scalar_select 0, %s5, %s3
  $region1: #{tpu_custom_call.1} parent=0
    #allocation2 [shape = 'u8[4096]{0}', space=vmem, size = 0x1000, scoped, tag = 'input window, operand 0, single buffered']
    #allocation3 [shape = 's32[1]{0}', space=sflag, size = 0x4, scoped, tag = 'scoped memory for tpu_custom_call.1']
    #allocation4 [shape = 's32[1]{0}', space=sflag, size = 0x4, scoped, tag = 'scoped memory for tpu_custom_call.1']
    #allocation5 [shape = 'u8[4096]{0}', space=vmem, size = 0x1000, scoped, tag = 'input window, operand 1, single buffered']
    #allocation6 [shape = 's32[1]{0}', space=sflag, size = 0x4, scoped, tag = 'scoped memory for tpu_custom_call.1']
    #allocation7 [shape = 'u8[512]{0}', space=vmem, size = 0x400, scoped, tag = 'output window, operand 0, single buffered']
    %7 = vsyncpa [#allocation3], 0
    %8 = vsyncpa [#allocation6], 0
    %9 = vsyncpa [#allocation4], 0
    // Predicated region
    $region2: #{tpu_custom_call.1} parent=1 // pred_check
      _
    $region3: #{tpu_custom_call.1} parent=1 // pred_check_branch
      %11 = sbr.rel (0) target = $region5
    $region4: #{tpu_custom_call.1} parent=1 // pred_region
      %13 = vsyncadd [#allocation3], 0
      %s14 = sshll.u32 %s0, 4
      %s15 = int_to_ptr.hbm [resolvable:$true] %s14
      %s16 = sshll.u32 [#allocation2], 4
      %s17 = int_to_ptr.vmem [resolvable:$true] %s16
      %22 = dma.hbm_to_vmem [thread:$0]  %s15, 128, %s17, [#allocation3], 64, 64, 4
    $region5: #{tpu_custom_call.1} parent=1 // pred_fallthru
      _
    // Predicated region
    $region6: #{tpu_custom_call.1} parent=1 // pred_check
      _
    $region7: #{tpu_custom_call.1} parent=1 // pred_check_branch
      %24 = sbr.rel (0) target = $region9
    $region8: #{tpu_custom_call.1} parent=1 // pred_region
      %26 = vsyncadd [#allocation6], 0
      %s27 = sshll.u32 %s1, 4
      %s28 = int_to_ptr.hbm [resolvable:$true] %s27
      %s29 = sshll.u32 [#allocation5], 4
      %s30 = int_to_ptr.vmem [resolvable:$true] %s29
      %35 = dma.hbm_to_vmem [thread:$0]  %s28, 128, %s30, [#allocation6], 64, 64, 4
    $region9: #{tpu_custom_call.1} parent=1 // pred_fallthru
      _
    // Predicated region
    $region10: #{tpu_custom_call.1} parent=1 // pred_check
      _
    $region11: #{tpu_custom_call.1} parent=1 // pred_check_branch
      %37 = sbr.rel (0) target = $region13
    $region12: #{tpu_custom_call.1} parent=1 // pred_region
      %39 = dma.done [#allocation3], 128
    $region13: #{tpu_custom_call.1} parent=1 // pred_fallthru
      _
    // Predicated region
    $region14: #{tpu_custom_call.1} parent=1 // pred_check
      _
    $region15: #{tpu_custom_call.1} parent=1 // pred_check_branch
      %41 = sbr.rel (0) target = $region17
    $region16: #{tpu_custom_call.1} parent=1 // pred_region
      %43 = dma.done [#allocation6], 128
    $region17: #{tpu_custom_call.1} parent=1 // pred_fallthru
      _
    %v45 = vld [vmem:[#allocation2] sm:$0xf]
    %v46 = vld [vmem:[#allocation2 + $0x4] sm:$0xf]
    %v47 = vld [vmem:[#allocation5] sm:$0xf]
    %v48 = vld [vmem:[#allocation5 + $0x4] sm:$0xf]
    %v51 = vunpack.c.l.b16 %v47
    %v52 = vunpack.c.l.b16 %v48
    %v53 = vpack.c.b16 %v52, %v51
    %v56 = vunpack.c.l.b16 %v45
    %v57 = vunpack.c.l.b16 %v46
    %v58 = vpack.c.b16 %v57, %v56
    %vm60 = vcmask 130048
    %v62 = vsel %vm60, %v53, 0
    %64 = vmatpush.bf16.msra.mxu0 0
    %65 = vmatpush.bf16.msra.mxu0 0
    %66 = vmatpush.bf16.msra.mxu0 0
    %67 = vmatpush.bf16.msra.mxu0 0
    %68 = vmatpush.bf16.msra.mxu0 0
    %69 = vmatpush.bf16.msra.mxu0 0
    %70 = vmatpush.bf16.msra.mxu0 0
    %71 = vmatpush.bf16.msra.mxu0 %v58
    %72 = vmatmul.bf16.gmra.mxu0 %v62
    %v73 = vpop.f32.mrf.mxu0
    %v74 = vadd.f32 0.0, %v73
    %v75 = vpop.f32.mrf.mxu0
    %v76 = vadd.f32 0.0, %v75
    %77 = vdwg.mxu0
    %v78 = vunpack.c.l.bf16 %v45
    %v79 = vunpack.c.l.bf16 %v46
    %v80 = vmul.f32 %v74, %v78
    %v81 = vmul.f32 %v76, %v79
    %v82 = vadd.f32 %v80, %v81
    %v83 = vrot.slane %v82, 4
    %v84 = vadd.f32 %v82, %v83
    %v85 = vrot.slane %v84, 2
    %v86 = vadd.f32 %v84, %v85
    %v87 = vrot.slane %v86, 1
    %v88 = vadd.f32 %v86, %v87
    %v89 = vxor.u32 %v88, 2147483648
    %v90 = vmul.f32 %v89, 1.442695
    %v91 = vpow.pop %v90
    %v92 = vadd.f32 %v91, 1.0
    %v93 = vrcp.pop %v92
    %v94 = vmul.f32 %v92, %v93
    %v95 = vsub.f32 1.0, %v94
    %v96 = vmul.f32 %v93, %v95
    %v97 = vadd.f32 %v93, %v96
    %vm98 = vweird.f32 %v92
    %vm99 = vweird.f32 %v93
    %vm100 = vmor %vm98, %vm99
    %v101 = vsel %vm100, %v93, %v97
    %v102 = vand.u32 2147483647, %v92
    %vm103 = vcmp.eq.f32.partialorder %v102, 8.507059e+37
    %v104 = vand.u32 %v92, 2147483648
    %v105 = vor.u32 1.1754944e-38, %v104
    %v106 = vsel %vm103, %v105, %v101
    %v107 = vmul.f32 1.0, %v106
    %108 = vst [vmem:[#allocation7] sm:$0x1] %v107
    // Predicated region
    $region18: #{tpu_custom_call.1} parent=1 // pred_check
      _
    $region19: #{tpu_custom_call.1} parent=1 // pred_check_branch
      %110 = sbr.rel (0) target = $region21
    $region20: #{tpu_custom_call.1} parent=1 // pred_region
      %112 = vsyncadd [#allocation4], 0
      %s114 = sshll.u32 [#allocation7], 4
      %s115 = int_to_ptr.vmem [resolvable:$true] %s114
      %s116 = sshll.u32 %s2, 4
      %s117 = int_to_ptr.hbm [resolvable:$true] %s116
      %119 = dma.vmem_to_hbm [thread:$0]  %s115, 16, %s117, [#allocation4]
    $region21: #{tpu_custom_call.1} parent=1 // pred_fallthru
      _
    // Predicated region
    $region22: #{tpu_custom_call.1} parent=1 // pred_check
      _
    $region23: #{tpu_custom_call.1} parent=1 // pred_check_branch
      %121 = sbr.rel (0) target = $region25
    $region24: #{tpu_custom_call.1} parent=1 // pred_region
      %123 = dma.done [#allocation4], 16
    $region25: #{tpu_custom_call.1} parent=1 // pred_fallthru
      _
    %124 = vsyncpa [#allocation3], 1
    %125 = vsyncpa [#allocation6], 1
    %126 = vsyncpa [#allocation4], 1

</llo_original>
